<compile_context>
chip_gen: v7x
topology: tpu7x:2x2x1
jax: 0.10.0
libtpu: 0.0.40
codegen_flags: <defaults>
</compile_context>

<pallas_src>
import functools
import math

import jax
import jax.numpy as jnp
from jax.experimental import pallas as pl
from jax.experimental.pallas import tpu as pltpu


# minimal sublane multiple for the second-to-last block dim, by itemsize
_SUBLANE = {1: 32, 2: 16, 4: 8, 8: 8}


def _concat_kernel(n_inputs, dims, *refs):
    """Copy each input block into its static lane-slice of the output block."""
    in_refs = refs[:n_inputs]
    out_ref = refs[n_inputs]
    offset = 0
    for r, d in zip(in_refs, dims):
        # cast on the VPU (free for a mem-bound copy); static lane slice.
        out_ref[:, offset:offset + d] = r[...].astype(out_ref.dtype)
        offset += d


def concat_combination(xs, dim=-1, *, max_tile_rows=2048,
                       vmem_budget_bytes=24 * 1024 * 1024):
    """Pallas implementation of ConcatCombination.forward (torch.cat(xs, dim))."""
    xs = list(xs)
    ndim = xs[0].ndim
    out_dtype = jnp.result_type(*[x.dtype for x in xs])

    # Non-last-dim concat: a lane-axis copy kernel gives no benefit; XLA concat
    # already runs at HBM roofline for this, and semantics are preserved.
    if dim not in (-1, ndim - 1):
        return jnp.concatenate([x.astype(out_dtype) for x in xs], axis=dim)

    batch_dims = xs[0].shape[:-1]
    for x in xs:
        assert x.shape[:-1] == batch_dims, "batch dims must match for concat on dim=-1"

    b_flat = int(math.prod(batch_dims)) if batch_dims else 1
    dims = tuple(int(x.shape[-1]) for x in xs)
    d_out = sum(dims)

    # Tiny lane width / tiny batch: pallas_call fixed overhead + masked stores
    # dominate -> use the native concatenate instead of the kernel.
    if d_out < 128 or b_flat < 8:
        return jnp.concatenate([x.astype(out_dtype) for x in xs], axis=-1)

    # Keep original dtypes; the cast happens inside the kernel.
    xs_flat = [x.reshape(b_flat, d) for x, d in zip(xs, dims)]

    out_itemsize = jnp.dtype(out_dtype).itemsize
    sub = _SUBLANE.get(out_itemsize, 8)

    # VMEM per grid step ~= 2 (double-buffer) * (sum of input rows + output row),
    # with each array counted at its own dtype width.
    in_bytes_per_row = sum(d * jnp.dtype(x.dtype).itemsize
                           for x, d in zip(xs, dims))
    out_bytes_per_row = d_out * out_itemsize
    bytes_per_row = 2 * (in_bytes_per_row + out_bytes_per_row)

    tb = max(sub, vmem_budget_bytes // bytes_per_row)
    tb = min(tb, max_tile_rows)
    tb = max(sub, (tb // sub) * sub)  # sublane-aligned tile rows

    if tb >= b_flat:
        block_b = b_flat        # single block; equal-to-full-dim is always legal
        grid = (1,)
    else:
        block_b = tb
        grid = (pl.cdiv(b_flat, tb),)  # Pallas masks the partial edge block

    kernel = functools.partial(_concat_kernel, len(xs), dims)

    bytes_accessed = (sum(x.size * jnp.dtype(x.dtype).itemsize for x in xs_flat)
                      + b_flat * d_out * out_itemsize)

    out_flat = pl.pallas_call(
        kernel,
        out_shape=jax.ShapeDtypeStruct((b_flat, d_out), out_dtype),
        grid=grid,
        in_specs=[pl.BlockSpec((block_b, d), lambda i: (i, 0)) for d in dims],
        out_specs=pl.BlockSpec((block_b, d_out), lambda i: (i, 0)),
        compiler_params=pltpu.CompilerParams(
            # batch axis is independent -> shard across both TCs on v7x
            dimension_semantics=("parallel",),
            # honor the tile budget even on v5e's 16 MiB default scoped limit;
            # 32 MiB is safe on v5e/v6e (128 MiB VMEM) and v7x (64 MiB VMEM).
            vmem_limit_bytes=32 * 1024 * 1024,
        ),
        cost_estimate=pl.CostEstimate(
            flops=0, transcendentals=0, bytes_accessed=int(bytes_accessed)),
    )(*xs_flat)

    return out_flat.reshape(*batch_dims, d_out)


if __name__ == "__main__":
    key = jax.random.PRNGKey(0)
    keys = jax.random.split(key, 6)

    # Test 1: kernel path, single block, 128-aligned lane offsets, mixed dtypes
    # (cast happens inside the kernel, matching torch.cat promotion).
    x1 = jax.random.normal(keys[0], (2, 8, 128), dtype=jnp.float32)
    x2 = jax.random.normal(keys[1], (2, 8, 128), dtype=jnp.bfloat16)
    x3 = jax.random.normal(keys[2], (2, 8, 256), dtype=jnp.float32)
    out = jax.block_until_ready(concat_combination([x1, x2, x3]))
    ref = jnp.concatenate(
        [x1.astype(jnp.float32), x2.astype(jnp.float32), x3.astype(jnp.float32)],
        axis=-1)
    assert out.shape == (2, 8, 512), out.shape
    assert out.dtype == jnp.float32, out.dtype
    assert jnp.array_equal(out, ref), "mismatch vs jnp.concatenate (test 1)"

    # Test 2: kernel path with a multi-step batch grid and a partial edge block
    # (b_flat=40, tile rows forced to 16 -> grid of 3, last block masked).
    y1 = jax.random.normal(keys[3], (5, 8, 128), dtype=jnp.float32)
    y2 = jax.random.normal(keys[4], (5, 8, 256), dtype=jnp.float32)
    out2 = jax.block_until_ready(concat_combination([y1, y2], max_tile_rows=16))
    ref2 = jnp.concatenate([y1, y2], axis=-1)
    assert out2.shape == (5, 8, 384), out2.shape
    assert jnp.array_equal(out2, ref2), "mismatch vs jnp.concatenate (test 2)"

    # Test 3: tiny lane width -> XLA concatenate fallback path (same semantics).
    z1 = jax.random.normal(keys[5], (2, 4, 16), dtype=jnp.float32)
    z2 = jax.random.normal(keys[0], (2, 4, 24), dtype=jnp.float32)
    out3 = jax.block_until_ready(concat_combination([z1, z2]))
    assert jnp.array_equal(out3, jnp.concatenate([z1, z2], axis=-1)), "mismatch (test 3)"

    # Test 4: non-last-dim concat -> fallback path, semantics preserved.
    w1 = jax.random.normal(keys[1], (3, 8, 128), dtype=jnp.float32)
    w2 = jax.random.normal(keys[2], (2, 8, 128), dtype=jnp.float32)
    out4 = jax.block_until_ready(concat_combination([w1, w2], dim=0))
    assert jnp.array_equal(out4, jnp.concatenate([w1, w2], axis=0)), "mismatch (test 4)"

    print("KERNEL_OK")
</pallas_src>

<mosaic_0001>
module attributes {stable_mosaic.version = 11 : i64} {
  func.func @_concat_kernel(%arg0: i32, %arg1: memref<16x128xf32, #tpu.memory_space<vmem>>, %arg2: memref<16x128xbf16, #tpu.memory_space<vmem>>, %arg3: memref<16x256xf32, #tpu.memory_space<vmem>>, %arg4: memref<16x512xf32, #tpu.memory_space<vmem>>) attributes {dimension_semantics = [#tpu.dimension_semantics<parallel>], iteration_bounds = array<i64: 1>, scalar_prefetch = 0 : i64, scratch_operands = 0 : i64, tpu.core_type = #tpu.core_type<tc>, window_params = [{transform_indices = @transform_0, window_bounds = array<i64: 16, 128>}, {transform_indices = @transform_1, window_bounds = array<i64: 16, 128>}, {transform_indices = @transform_2, window_bounds = array<i64: 16, 256>}, {transform_indices = @transform_3, window_bounds = array<i64: 16, 512>}]} {
    %c0 = arith.constant 0 : index
    %c0_0 = arith.constant 0 : index
    %0 = vector.load %arg1[%c0, %c0_0] : memref<16x128xf32, #tpu.memory_space<vmem>>, vector<16x128xf32>
    %c0_1 = arith.constant 0 : index
    %c0_2 = arith.constant 0 : index
    %1 = vector.load %arg4[%c0_1, %c0_2] : memref<16x512xf32, #tpu.memory_space<vmem>>, vector<16x128xf32>
    tpu.vector_store %arg4[%c0_1, %c0_2], %0 {strides = array<i32>} : memref<16x512xf32, #tpu.memory_space<vmem>>, vector<16x128xf32>,
    %c0_3 = arith.constant 0 : index
    %c0_4 = arith.constant 0 : index
    %2 = vector.load %arg2[%c0_3, %c0_4] : memref<16x128xbf16, #tpu.memory_space<vmem>>, vector<16x128xbf16>
    %3 = arith.extf %2 : vector<16x128xbf16> to vector<16x128xf32>
    %c0_5 = arith.constant 0 : index
    %c128 = arith.constant 128 : index
    %4 = vector.load %arg4[%c0_5, %c128] : memref<16x512xf32, #tpu.memory_space<vmem>>, vector<16x128xf32>
    tpu.vector_store %arg4[%c0_5, %c128], %3 {strides = array<i32>} : memref<16x512xf32, #tpu.memory_space<vmem>>, vector<16x128xf32>,
    %c0_6 = arith.constant 0 : index
    %c0_7 = arith.constant 0 : index
    %5 = vector.load %arg3[%c0_6, %c0_7] : memref<16x256xf32, #tpu.memory_space<vmem>>, vector<16x256xf32>
    %c0_8 = arith.constant 0 : index
    %c256 = arith.constant 256 : index
    %6 = vector.load %arg4[%c0_8, %c256] : memref<16x512xf32, #tpu.memory_space<vmem>>, vector<16x256xf32>
    tpu.vector_store %arg4[%c0_8, %c256], %5 {strides = array<i32>} : memref<16x512xf32, #tpu.memory_space<vmem>>, vector<16x256xf32>,
    return
  }
  func.func @transform_0(%arg0: i32) -> (i32, i32) {
    %c0_i32 = arith.constant 0 : i32
    %c0_i32_0 = arith.constant 0 : i32
    return %arg0, %c0_i32 : i32, i32
  }
  func.func @transform_1(%arg0: i32) -> (i32, i32) {
    %c0_i32 = arith.constant 0 : i32
    %c0_i32_0 = arith.constant 0 : i32
    return %arg0, %c0_i32 : i32, i32
  }
  func.func @transform_2(%arg0: i32) -> (i32, i32) {
    %c0_i32 = arith.constant 0 : i32
    %c0_i32_0 = arith.constant 0 : i32
    return %arg0, %c0_i32 : i32, i32
  }
  func.func @transform_3(%arg0: i32) -> (i32, i32) {
    %c0_i32 = arith.constant 0 : i32
    %c0_i32_0 = arith.constant 0 : i32
    return %arg0, %c0_i32 : i32, i32
  }
}

</mosaic_0001>

<llo_original>
// kernel: tpu_custom_call.1
$region0: #{tpu_custom_call.1}
  #allocation0 [shape = 'u32[]', space=smem, size = 0x4, offset = 0x4, fixed_abs, tag = 'smem constant byte address 0x4 - core index']
  #allocation1 [shape = 'u32[144,128]{1,0:T(1,128)}', space=vmem, size = 0x12000, scoped, tag = 'internal scratch']
  %s0 = inlined_call_operand.hbm [shape: f32[16,128], index: 0, kind: input, shape index: {}]
  %s1 = inlined_call_operand.hbm [shape: bf16[16,128], index: 1, kind: input, shape index: {}]
  %s2 = inlined_call_operand.hbm [shape: f32[16,256], index: 2, kind: input, shape index: {}]
  %s3 = inlined_call_operand.hbm [shape: f32[16,512], index: 3, kind: output, shape index: {}]
  %s4 = sld [smem:[#allocation0]]
  $region34: #{tpu_custom_call.1} parent=0
    _
  %s6 = ssub.s32 1, %s4
  %s7 = scalar_select 0, %s6, %s4
  $region1: #{tpu_custom_call.1} parent=0
    #allocation2 [shape = 'u8[8192]{0}', space=vmem, size = 0x2000, scoped, tag = 'input window, operand 0, single buffered']
    #allocation3 [shape = 's32[1]{0}', space=sflag, size = 0x4, scoped, tag = 'scoped memory for tpu_custom_call.1']
    #allocation4 [shape = 's32[1]{0}', space=sflag, size = 0x4, scoped, tag = 'scoped memory for tpu_custom_call.1']
    #allocation5 [shape = 'u8[4096]{0}', space=vmem, size = 0x1000, scoped, tag = 'input window, operand 1, single buffered']
    #allocation6 [shape = 's32[1]{0}', space=sflag, size = 0x4, scoped, tag = 'scoped memory for tpu_custom_call.1']
    #allocation7 [shape = 'u8[16384]{0}', space=vmem, size = 0x4000, scoped, tag = 'input window, operand 2, single buffered']
    #allocation8 [shape = 'u8[32768]{0}', space=vmem, size = 0x8000, scoped, tag = 'output window, operand 0, single buffered']
    %8 = vsyncpa [#allocation3], 0
    %9 = vsyncpa [#allocation6], 0
    %10 = vsyncpa [#allocation4], 0
    // Predicated region
    $region2: #{tpu_custom_call.1} parent=1 // pred_check
      _
    $region3: #{tpu_custom_call.1} parent=1 // pred_check_branch
      %12 = sbr.rel (0) target = $region5
    $region4: #{tpu_custom_call.1} parent=1 // pred_region
      %s14 = ssub.s32 256, 256
      %15 = vsyncadd [#allocation3], %s14
      %s16 = sshll.u32 [#allocation2], 4
      %s17 = int_to_ptr.vmem [resolvable:$true] %s16
      %22 = dma.hbm_to_vmem [thread:$0]  %s0, 256, %s17, [#allocation3], 128, 128, 8
    $region5: #{tpu_custom_call.1} parent=1 // pred_fallthru
      _
    // Predicated region
    $region6: #{tpu_custom_call.1} parent=1 // pred_check
      _
    $region7: #{tpu_custom_call.1} parent=1 // pred_check_branch
      %24 = sbr.rel (0) target = $region9
    $region8: #{tpu_custom_call.1} parent=1 // pred_region
      %s26 = ssub.s32 128, 128
      %27 = vsyncadd [#allocation6], %s26
      %s28 = sshll.u32 [#allocation5], 4
      %s29 = int_to_ptr.vmem [resolvable:$true] %s28
      %34 = dma.hbm_to_vmem [thread:$0]  %s1, 128, %s29, [#allocation6], 64, 64, 4
    $region9: #{tpu_custom_call.1} parent=1 // pred_fallthru
      _
    // Predicated region
    $region10: #{tpu_custom_call.1} parent=1 // pred_check
      _
    $region11: #{tpu_custom_call.1} parent=1 // pred_check_branch
      %36 = sbr.rel (0) target = $region13
    $region12: #{tpu_custom_call.1} parent=1 // pred_region
      %s38 = ssub.s32 512, 512
      %39 = vsyncadd [#allocation6], %s38
      %s40 = sshll.u32 [#allocation7], 4
      %s41 = int_to_ptr.vmem [resolvable:$true] %s40
      %46 = dma.hbm_to_vmem [thread:$0]  %s2, 512, %s41, [#allocation6], 256, 256, 16
    $region13: #{tpu_custom_call.1} parent=1 // pred_fallthru
      _
    // Predicated region
    $region14: #{tpu_custom_call.1} parent=1 // pred_check
      _
    $region15: #{tpu_custom_call.1} parent=1 // pred_check_branch
      %48 = sbr.rel (0) target = $region17
    $region16: #{tpu_custom_call.1} parent=1 // pred_region
      %49 = dma.done [#allocation3], 256
    $region17: #{tpu_custom_call.1} parent=1 // pred_fallthru
      _
    // Predicated region
    $region18: #{tpu_custom_call.1} parent=1 // pred_check
      _
    $region19: #{tpu_custom_call.1} parent=1 // pred_check_branch
      %51 = sbr.rel (0) target = $region21
    $region20: #{tpu_custom_call.1} parent=1 // pred_region
      %52 = dma.done [#allocation6], 128
    $region21: #{tpu_custom_call.1} parent=1 // pred_fallthru
      _
    // Predicated region
    $region22: #{tpu_custom_call.1} parent=1 // pred_check
      _
    $region23: #{tpu_custom_call.1} parent=1 // pred_check_branch
      %54 = sbr.rel (0) target = $region25
    $region24: #{tpu_custom_call.1} parent=1 // pred_region
      %55 = dma.done [#allocation6], 512
    $region25: #{tpu_custom_call.1} parent=1 // pred_fallthru
      _
    %v56 = vld [vmem:[#allocation2] sm:$0xff]
    %v57 = vld [vmem:[#allocation2 + $0x8] sm:$0xff]
    %58 = vst [vmem:[#allocation8] sm:$0xff] %v56
    %59 = vst [vmem:[#allocation8 + $0x20] sm:$0xff] %v57
    %v60 = vld [vmem:[#allocation5] sm:$0xf]
    %v61 = vld [vmem:[#allocation5 + $0x4] sm:$0xf]
    %v62 = vunpack.c.l.bf16 %v60
    %v63 = vunpack.c.l.bf16 %v61
    %64 = vst [vmem:[#allocation8 + $0x8] sm:$0xff] %v62
    %65 = vst [vmem:[#allocation8 + $0x28] sm:$0xff] %v63
    %v66 = vld [vmem:[#allocation7] sm:$0xff]
    %v67 = vld [vmem:[#allocation7 + $0x8] sm:$0xff]
    %v68 = vld [vmem:[#allocation7 + $0x10] sm:$0xff]
    %v69 = vld [vmem:[#allocation7 + $0x18] sm:$0xff]
    %70 = vst [vmem:[#allocation8 + $0x10] sm:$0xff] %v66
    %71 = vst [vmem:[#allocation8 + $0x18] sm:$0xff] %v67
    %72 = vst [vmem:[#allocation8 + $0x30] sm:$0xff] %v68
    %73 = vst [vmem:[#allocation8 + $0x38] sm:$0xff] %v69
    // Predicated region
    $region26: #{tpu_custom_call.1} parent=1 // pred_check
      _
    $region27: #{tpu_custom_call.1} parent=1 // pred_check_branch
      %75 = sbr.rel (0) target = $region29
    $region28: #{tpu_custom_call.1} parent=1 // pred_region
      %s77 = ssub.s32 1024, 1024
      %78 = vsyncadd [#allocation4], %s77
      %s79 = sshll.u32 [#allocation8], 4
      %s80 = int_to_ptr.vmem [resolvable:$true] %s79
      %85 = dma.vmem_to_hbm [thread:$0]  %s80, 1024, %s3, [#allocation4], 512, 512, 32
    $region29: #{tpu_custom_call.1} parent=1 // pred_fallthru
      _
    // Predicated region
    $region30: #{tpu_custom_call.1} parent=1 // pred_check
      _
    $region31: #{tpu_custom_call.1} parent=1 // pred_check_branch
      %87 = sbr.rel (0) target = $region33
    $region32: #{tpu_custom_call.1} parent=1 // pred_region
      %88 = dma.done [#allocation4], 1024
    $region33: #{tpu_custom_call.1} parent=1 // pred_fallthru
      _
    %89 = vsyncpa [#allocation3], 1
    %90 = vsyncpa [#allocation6], 1
    %91 = vsyncpa [#allocation4], 1

</llo_original>
